<compile_context>
chip_gen: v5e
topology: v5e:2x2
jax: 0.10.0
libtpu: 0.0.40
codegen_flags: <defaults>
</compile_context>

<pallas_src>
import functools

import jax
import jax.numpy as jnp
from jax.experimental import pallas as pl
from jax.experimental.pallas import tpu as pltpu

EMB = 200      # fixed by nn.Conv2d(1, 1, (1, 200))
_LANE = 128


def _ceil_to(v, m):
    return -(-v // m) * m


def _identity_kernel(x_ref, wconv_ref, bconv_ref, w1_ref, o_ref, *,
                     seq_len, ts, ksteps, nk):
    # x_ref:     (TB, TS, E)  VMEM  activation tile
    # wconv_ref: (1, E)       VMEM  conv1 weight (squeezed from (1,1,1,E))
    # bconv_ref: (1,)         SMEM  conv1 bias (scalar path)
    # w1_ref:    (TS, O)      VMEM  fc1 weight, pre-transposed to (in, out)
    # o_ref:     (1, TB, O)   VMEM  f32 partial accumulator, resident across j
    s = pl.program_id(0)            # reduction-split index ("parallel")
    j = pl.program_id(2)            # local S-block index ("arbitrary")
    g = s * ksteps + j              # global S-block index

    @pl.when(j == 0)
    def _():
        o_ref[...] = jnp.zeros_like(o_ref)

    # --- conv1 + ReLU: per-row dot over the embedding axis (VPU/XLU).  On
    # v5e/v6e this is free filler under the x DMA; on v7x (~2.3x HBM BW) the
    # DMA window shrinks, so re-check the bundle dump.
    # TODO(synk): if VALU/XLU binds on v7x, split the E=200 reduce into a
    # dense 128-lane chunk plus a masked 72-lane remainder.
    x = x_ref[...]                                     # (TB, TS, E)
    wc = wconv_ref[...]                                # (1, E)
    y = jnp.sum(x * wc[None, :, :], axis=-1) + bconv_ref[0]
    y = jnp.maximum(y, 0.0)                            # (TB, TS)
    w = w1_ref[...]                                    # (TS, O)

    def accumulate(yv, wv):
        o_ref[...] += jax.lax.dot_general(
            yv, wv, dimension_numbers=(((1,), (0,)), ((), ())),
            preferred_element_type=jnp.float32)[None]

    if seq_len % ts != 0:
        # Only the last global S tile is ragged.  Gate the mask there so the
        # steady-state steps carry no iota/compare/select VALU work, and mask
        # BOTH operands: stale VMEM in the padded region of either block may
        # decode to NaN/Inf and 0 * NaN = NaN would poison the accumulator.
        is_last_g = g == nk - 1

        @pl.when(jnp.logical_not(is_last_g))
        def _():
            accumulate(y, w)

        @pl.when(is_last_g)
        def _():
            base = g * ts
            yrow = jax.lax.broadcasted_iota(jnp.int32, y.shape, 1) + base
            wrow = jax.lax.broadcasted_iota(jnp.int32, w.shape, 0) + base
            accumulate(jnp.where(yrow < seq_len, y, 0.0),
                       jnp.where(wrow < seq_len, w, 0.0))
    else:
        accumulate(y, w)


def identity_forward(x, w_conv, b_conv, w1, b1, *, tb=None, ts=None,
                     num_splits=None):
    """Identity.forward.

    x:      (B, S, 200) f32 Performer output.
    w_conv: (1, 200)    conv1 weight (squeezed from (1, 1, 1, 200)).
    b_conv: (1,)        conv1 bias.
    w1:     (O, S)      fc1 weight, PyTorch-native (out, in) layout.
    b1:     (O,)        fc1 bias.
    """
    B, S, E = x.shape
    assert E == EMB
    O, s_w = w1.shape
    assert s_w == S
    assert w_conv.shape == (1, EMB)
    assert b_conv.shape == (1,)
    assert b1.shape == (O,)

    # --- VMEM-aware tile selection ---------------------------------------
    # The x block occupies tb * ceil8(ts) * 256 * 4 B of VMEM (the E axis
    # lane-pads 200 -> 256), and the BlockSpec pipeline double-buffers it.
    # v7x: 64 MiB per TensorCore  -> tb*ts ~= 16384 (~33.5 MiB of x buffers).
    # v5e/v6e: 128 MiB physical   -> tb*ts ~= 32768 (~67 MiB of x buffers).
    try:
        vmem_cap = int(pltpu.get_tpu_info().vmem_capacity_bytes)
    except Exception:
        vmem_cap = 64 * 1024 * 1024            # conservative: v7x per-TC VMEM
    big_vmem = vmem_cap >= 96 * 1024 * 1024    # v5e / v6e

    if tb is None:
        tb = B if B <= 8 else (16 if big_vmem else 8)
    if ts is None:
        budget = 32768 if big_vmem else 16384  # target tb*ts elements / buffer
        max_ts = max(512, (budget // tb) // _LANE * _LANE)
        ts = S if S <= max_ts else max_ts

    ni = pl.cdiv(B, tb)
    nk = pl.cdiv(S, ts)

    # --- Reduction split across cores (v7x megacore) ----------------------
    # When B <= tb the batch "parallel" axis has extent 1 and v7x's second
    # TensorCore would idle; split the S reduction into per-core partials and
    # combine them in the tiny XLA epilogue.  Harmless on single-core chips.
    if num_splits is None:
        num_splits = 2 if (ni == 1 and nk >= 2 and nk % 2 == 0) else 1
    assert nk % num_splits == 0, "num_splits must divide the number of S tiles"
    ksteps = nk // num_splits

    kernel = functools.partial(_identity_kernel, seq_len=S, ts=ts,
                               ksteps=ksteps, nk=nk)

    # fc1 weight pre-transposed ONCE to (S, O): the in-kernel dot is a plain
    # (tb, ts) @ (ts, O) MXU matmul with no per-step transpose.  The (ts, O)
    # block lane-pads O -> 128 (~1 MiB / buffer at ts=2048): cheap.
    w1_so = w1.T

    # Padded (sublane/lane) VMEM need: double-buffered inputs + output block.
    x_buf = tb * _ceil_to(ts, 8) * _ceil_to(EMB, _LANE) * 4
    w_buf = _ceil_to(ts, 8) * _ceil_to(O, _LANE) * 4
    wc_buf = 8 * _ceil_to(EMB, _LANE) * 4
    o_buf = _ceil_to(tb, 8) * _ceil_to(O, _LANE) * 4
    vmem_need = 2 * (x_buf + w_buf + wc_buf + o_buf)
    vmem_limit = int(min(max(vmem_need + (8 << 20), 32 << 20),
                         max(vmem_cap - (8 << 20), 32 << 20)))

    # Advisory cost hint: bandwidth-bound, trivial FLOPs.
    flops = 2 * B * S * (EMB + O)
    bytes_accessed = 4 * (B * S * EMB + S * O + num_splits * B * O + EMB + 1)

    partials = pl.pallas_call(
        kernel,
        out_shape=jax.ShapeDtypeStruct((num_splits, B, O), jnp.float32),
        grid_spec=pltpu.PrefetchScalarGridSpec(
            num_scalar_prefetch=0,
            grid=(num_splits, ni, ksteps),
            in_specs=[
                pl.BlockSpec((tb, ts, EMB),
                             lambda s, i, j: (i, s * ksteps + j, 0)),        # x
                pl.BlockSpec((1, EMB), lambda s, i, j: (0, 0)),              # conv1 w
                pl.BlockSpec(memory_space=pltpu.MemorySpace.SMEM),           # conv1 b
                pl.BlockSpec((ts, O),
                             lambda s, i, j: (s * ksteps + j, 0)),           # fc1 w (S, O)
            ],
            out_specs=pl.BlockSpec((1, tb, O), lambda s, i, j: (s, i, 0)),
        ),
        compiler_params=pltpu.CompilerParams(
            dimension_semantics=("parallel", "parallel", "arbitrary"),
            vmem_limit_bytes=vmem_limit,
        ),
        cost_estimate=pl.CostEstimate(
            flops=flops, bytes_accessed=bytes_accessed, transcendentals=0),
    )(x, w_conv, b_conv, w1_so)

    # Tiny XLA epilogue: combine reduction-split partials, fc1 bias, ReLU.
    return jnp.maximum(jnp.sum(partials, axis=0) + b1[None, :], 0.0)


if __name__ == "__main__":
    key = jax.random.PRNGKey(0)

    def make_inputs(k, B, S, O):
        kx, kwc, kbc, kw1, kb1 = jax.random.split(k, 5)
        x = jax.random.normal(kx, (B, S, EMB), dtype=jnp.float32)
        # Deterministic PyTorch-style uniform init (bounds = 1/sqrt(fan_in)).
        cb = 1.0 / jnp.sqrt(jnp.float32(EMB))
        w_conv = jax.random.uniform(kwc, (1, EMB), jnp.float32, -cb, cb)
        b_conv = jax.random.uniform(kbc, (1,), jnp.float32, -cb, cb)
        fb = 1.0 / jnp.sqrt(jnp.float32(S))
        w1 = jax.random.uniform(kw1, (O, S), jnp.float32, -fb, fb)   # PyTorch (out, in)
        b1 = jax.random.uniform(kb1, (O,), jnp.float32, -fb, fb)
        return x, w_conv, b_conv, w1, b1

    def reference(x, w_conv, b_conv, w1, b1):
        y = jnp.maximum(jnp.einsum("bse,e->bs", x, w_conv[0]) + b_conv[0], 0.0)
        return jnp.maximum(y @ w1.T + b1[None, :], 0.0)

    k1, k2 = jax.random.split(key)

    # Test 1: shapes consistent with the module (gene_num=15 -> SEQ_LEN=16).
    B, S, O = 2, 16, 10
    x, wc, bc, w1, b1 = make_inputs(k1, B, S, O)
    out = jax.block_until_ready(identity_forward(x, wc, bc, w1, b1))
    ref = reference(x, wc, bc, w1, b1)
    assert out.shape == (B, O)
    assert jnp.allclose(out, ref, atol=1e-5, rtol=1e-5), "test 1 mismatch"

    # Test 2: multi-step ragged S grid -> exercises the reduction split
    # (num_splits=2), the resident accumulator, and the gated last-tile mask.
    B, S, O = 4, 200, 10
    x, wc, bc, w1, b1 = make_inputs(k2, B, S, O)
    out = jax.block_until_ready(identity_forward(x, wc, bc, w1, b1, tb=4, ts=128))
    ref = reference(x, wc, bc, w1, b1)
    assert out.shape == (B, O)
    assert jnp.allclose(out, ref, atol=1e-4, rtol=1e-5), "test 2 mismatch"

    print("KERNEL_OK")
</pallas_src>

<mosaic_0001>
module attributes {stable_mosaic.version = 11 : i64} {
  func.func @_identity_kernel(%arg0: i32, %arg1: i32, %arg2: i32, %arg3: memref<2x16x200xf32, #tpu.memory_space<vmem>>, %arg4: memref<1x200xf32, #tpu.memory_space<vmem>>, %arg5: memref<1xf32, #tpu.memory_space<smem>>, %arg6: memref<16x10xf32, #tpu.memory_space<vmem>>, %arg7: memref<1x2x10xf32, #tpu.memory_space<vmem>>) attributes {dimension_semantics = [#tpu.dimension_semantics<parallel>, #tpu.dimension_semantics<parallel>, #tpu.dimension_semantics<arbitrary>], iteration_bounds = array<i64: 1, 1, 1>, scalar_prefetch = 0 : i64, scratch_operands = 0 : i64, tpu.core_type = #tpu.core_type<tc>, window_params = [{transform_indices = @transform_0, window_bounds = array<i64: 2, 16, 200>}, {pipeline_mode = #tpu.pipeline_mode<synchronous>, transform_indices = @transform_1, window_bounds = array<i64: 1, 200>}, {transform_indices = @transform_2, window_bounds = array<i64: 1>}, {transform_indices = @transform_3, window_bounds = array<i64: 16, 10>}, {transform_indices = @transform_4, window_bounds = array<i64: 1, 2, 10>}]} {
    %c0_i32 = arith.constant 0 : i32
    %0 = arith.cmpi eq, %arg2, %c0_i32 : i32
    %1 = arith.extui %0 : i1 to i32
    %c0_i32_0 = arith.constant 0 : i32
    %2 = arith.cmpi ne, %1, %c0_i32_0 : i32
    scf.if %2 {
      %cst_16 = arith.constant 0.000000e+00 : f32
      %20 = vector.broadcast %cst_16 : f32 to vector<1x2x10xf32>
      %c0_17 = arith.constant 0 : index
      %c0_18 = arith.constant 0 : index
      %c0_19 = arith.constant 0 : index
      %21 = vector.load %arg7[%c0_17, %c0_18, %c0_19] : memref<1x2x10xf32, #tpu.memory_space<vmem>>, vector<1x2x10xf32>
      tpu.vector_store %arg7[%c0_17, %c0_18, %c0_19], %20 {strides = array<i32>} : memref<1x2x10xf32, #tpu.memory_space<vmem>>, vector<1x2x10xf32>,
    } else {
    }
    %c0 = arith.constant 0 : index
    %c0_1 = arith.constant 0 : index
    %c0_2 = arith.constant 0 : index
    %3 = vector.load %arg3[%c0, %c0_1, %c0_2] : memref<2x16x200xf32, #tpu.memory_space<vmem>>, vector<2x16x200xf32>
    %c0_3 = arith.constant 0 : index
    %c0_4 = arith.constant 0 : index
    %4 = vector.load %arg4[%c0_3, %c0_4] : memref<1x200xf32, #tpu.memory_space<vmem>>, vector<1x200xf32>
    %5 = vector.shape_cast %4 : vector<1x200xf32> to vector<1x1x200xf32>
    %6 = vector.broadcast %5 : vector<1x1x200xf32> to vector<2x16x200xf32>
    %7 = arith.mulf %3, %6 : vector<2x16x200xf32>
    %cst = arith.constant dense<0.000000e+00> : vector<2x16xf32>
    %8 = vector.multi_reduction <add>, %7, %cst [2] : vector<2x16x200xf32> to vector<2x16xf32>
    %c0_5 = arith.constant 0 : index
    %9 = memref.load %arg5[%c0_5] : memref<1xf32, #tpu.memory_space<smem>>
    %10 = vector.broadcast %9 : f32 to vector<2x16xf32>
    %11 = arith.addf %8, %10 : vector<2x16xf32>
    %cst_6 = arith.constant 0.000000e+00 : f32
    %12 = vector.broadcast %cst_6 : f32 to vector<2x16xf32>
    %13 = arith.maximumf %11, %12 : vector<2x16xf32>
    %c0_7 = arith.constant 0 : index
    %c0_8 = arith.constant 0 : index
    %14 = vector.load %arg6[%c0_7, %c0_8] : memref<16x10xf32, #tpu.memory_space<vmem>>, vector<16x10xf32>
    %c0_9 = arith.constant 0 : index
    %c0_10 = arith.constant 0 : index
    %c0_11 = arith.constant 0 : index
    %15 = vector.load %arg7[%c0_9, %c0_10, %c0_11] : memref<1x2x10xf32, #tpu.memory_space<vmem>>, vector<1x2x10xf32>
    %cst_12 = arith.constant dense<0.000000e+00> : vector<2x10xf32>
    %16 = tpu.matmul %13, %14, %cst_12 {dimension_numbers = #tpu.dot_dimension_numbers<[1], [0], [0], [1], [0, 0, 1, 1], [], []>} : vector<2x16xf32>, vector<16x10xf32>, vector<2x10xf32> -> vector<2x10xf32>
    %17 = vector.shape_cast %16 : vector<2x10xf32> to vector<1x2x10xf32>
    %18 = arith.addf %15, %17 : vector<1x2x10xf32>
    %c0_13 = arith.constant 0 : index
    %c0_14 = arith.constant 0 : index
    %c0_15 = arith.constant 0 : index
    %19 = vector.load %arg7[%c0_13, %c0_14, %c0_15] : memref<1x2x10xf32, #tpu.memory_space<vmem>>, vector<1x2x10xf32>
    tpu.vector_store %arg7[%c0_13, %c0_14, %c0_15], %18 {strides = array<i32>} : memref<1x2x10xf32, #tpu.memory_space<vmem>>, vector<1x2x10xf32>,
    return
  }
  func.func @transform_0(%arg0: i32, %arg1: i32, %arg2: i32) -> (i32, i32, i32) {
    %c1_i32 = arith.constant 1 : i32
    %0 = arith.muli %arg0, %c1_i32 : i32
    %1 = arith.addi %0, %arg2 : i32
    %c0_i32 = arith.constant 0 : i32
    %c0_i32_0 = arith.constant 0 : i32
    return %arg1, %1, %c0_i32 : i32, i32, i32
  }
  func.func @transform_1(%arg0: i32, %arg1: i32, %arg2: i32) -> (i32, i32) {
    %c0_i32 = arith.constant 0 : i32
    %c0_i32_0 = arith.constant 0 : i32
    %c0_i32_1 = arith.constant 0 : i32
    return %c0_i32, %c0_i32_0 : i32, i32
  }
  func.func @transform_2(%arg0: i32, %arg1: i32, %arg2: i32) -> i32 {
    %c0_i32 = arith.constant 0 : i32
    %c0_i32_0 = arith.constant 0 : i32
    return %c0_i32 : i32
  }
  func.func @transform_3(%arg0: i32, %arg1: i32, %arg2: i32) -> (i32, i32) {
    %c1_i32 = arith.constant 1 : i32
    %0 = arith.muli %arg0, %c1_i32 : i32
    %1 = arith.addi %0, %arg2 : i32
    %c0_i32 = arith.constant 0 : i32
    %c0_i32_0 = arith.constant 0 : i32
    return %1, %c0_i32 : i32, i32
  }
  func.func @transform_4(%arg0: i32, %arg1: i32, %arg2: i32) -> (i32, i32, i32) {
    %c0_i32 = arith.constant 0 : i32
    %c0_i32_0 = arith.constant 0 : i32
    return %arg0, %arg1, %c0_i32 : i32, i32, i32
  }
}

</mosaic_0001>

<llo_original>
// kernel: tpu_custom_call.1
$region0: #{tpu_custom_call.1}
  #allocation0 [shape = 'u32[]', space=smem, size = 0x4, offset = 0x4, fixed_abs, tag = 'smem constant byte address 0x4 - core index']
  #allocation1 [shape = 'u32[72,128]{1,0:T(1,128)}', space=vmem, size = 0x9000, scoped, tag = 'internal scratch']
  #allocation2 [shape = 'f32[1]{0:T(128)S(6)}', space=smem, size = 0x200, scoped, tag = 'scoped memory for tpu_custom_call.1']
  %s0 = inlined_call_operand.hbm [shape: f32[2,16,200], index: 0, kind: input, shape index: {}]
  %s1 = inlined_call_operand.vmem [shape: f32[1,200], index: 1, kind: input, shape index: {}]
  %s2 = inlined_call_operand.<no memory space> [shape: f32[1], index: 2, kind: input, shape index: {}]
  %s3 = inlined_call_operand.hbm [shape: f32[16,10], index: 3, kind: input, shape index: {}]
  %s4 = inlined_call_operand.hbm [shape: f32[1,2,10], index: 4, kind: output, shape index: {}]
  %s5 = sld [smem:[#allocation0]]
  $region38: #{tpu_custom_call.1} parent=0
    _
  %s7 = ssub.s32 1, %s5
  %s8 = scalar_select 0, %s7, %s5
  %9 = sst [smem:[#allocation2]] %s2
  $region1: #{tpu_custom_call.1} parent=0
    #allocation3 [shape = 'u8[32768]{0}', space=vmem, size = 0x8000, scoped, tag = 'input window, operand 0, single buffered']
    #allocation4 [shape = 's32[1]{0}', space=sflag, size = 0x4, scoped, tag = 'scoped memory for tpu_custom_call.1']
    #allocation5 [shape = 's32[1]{0}', space=sflag, size = 0x4, scoped, tag = 'scoped memory for tpu_custom_call.1']
    #allocation6 [shape = 'u8[8192]{0}', space=vmem, size = 0x2000, scoped, tag = 'input window, operand 3, single buffered']
    #allocation7 [shape = 's32[1]{0}', space=sflag, size = 0x4, scoped, tag = 'scoped memory for tpu_custom_call.1']
    #allocation8 [shape = 'u8[1024]{0}', space=vmem, size = 0x400, scoped, tag = 'output window, operand 0, single buffered']
    %10 = vsyncpa [#allocation4], 0
    %11 = vsyncpa [#allocation7], 0
    %12 = vsyncpa [#allocation5], 0
    // Predicated region
    $region2: #{tpu_custom_call.1} parent=1 // pred_check
      _
    $region3: #{tpu_custom_call.1} parent=1 // pred_check_branch
      %14 = sbr.rel (0) target = $region5
    $region4: #{tpu_custom_call.1} parent=1 // pred_region
      %s15 = sadd.s32 0, 0
      %s16 = smul.u32 2, %s15
      %18 = vsyncadd [#allocation4], 0
      %s19 = smul.addr %s16, 2
      %s20 = smul.addr %s19, 8
      %s21 = scalar_lea.hbm %s0, %s20
      %s22 = sshll.u32 %s21, 4
      %s23 = int_to_ptr.hbm [resolvable:$true] %s22
      %s24 = sshll.u32 [#allocation3], 4
      %s25 = int_to_ptr.vmem [resolvable:$true] %s24
      %30 = dma.hbm_to_vmem [thread:$0]  %s23, 1024, %s25, [#allocation4], 256, 256, 16
    $region5: #{tpu_custom_call.1} parent=1 // pred_fallthru
      _
    // Predicated region
    $region6: #{tpu_custom_call.1} parent=1 // pred_check
      _
    $region7: #{tpu_custom_call.1} parent=1 // pred_check_branch
      %32 = sbr.rel (0) target = $region9
    $region8: #{tpu_custom_call.1} parent=1 // pred_region
      _
    $region9: #{tpu_custom_call.1} parent=1 // pred_fallthru
      _
    // Predicated region
    $region10: #{tpu_custom_call.1} parent=1 // pred_check
      _
    $region11: #{tpu_custom_call.1} parent=1 // pred_check_branch
      %34 = sbr.rel (0) target = $region13
    $region12: #{tpu_custom_call.1} parent=1 // pred_region
      _
    $region13: #{tpu_custom_call.1} parent=1 // pred_fallthru
      _
    // Predicated region
    $region14: #{tpu_custom_call.1} parent=1 // pred_check
      _
    $region15: #{tpu_custom_call.1} parent=1 // pred_check_branch
      %36 = sbr.rel (0) target = $region17
    $region16: #{tpu_custom_call.1} parent=1 // pred_region
      %s37 = sadd.s32 0, 0
      %s38 = smul.u32 2, %s37
      %40 = vsyncadd [#allocation7], 0
      %s41 = smul.addr %s38, 8
      %s42 = scalar_lea.hbm %s3, %s41
      %s43 = sshll.u32 %s42, 4
      %s44 = int_to_ptr.hbm [resolvable:$true] %s43
      %s45 = sshll.u32 [#allocation6], 4
      %s46 = int_to_ptr.vmem [resolvable:$true] %s45
      %51 = dma.hbm_to_vmem [thread:$0]  %s44, 256, %s46, [#allocation7], 128, 128, 8
    $region17: #{tpu_custom_call.1} parent=1 // pred_fallthru
      _
    // Predicated region
    $region18: #{tpu_custom_call.1} parent=1 // pred_check
      _
    $region19: #{tpu_custom_call.1} parent=1 // pred_check_branch
      %53 = sbr.rel (0) target = $region21
    $region20: #{tpu_custom_call.1} parent=1 // pred_region
      %55 = dma.done [#allocation4], 1024
    $region21: #{tpu_custom_call.1} parent=1 // pred_fallthru
      _
    // Predicated region
    $region22: #{tpu_custom_call.1} parent=1 // pred_check
      _
    $region23: #{tpu_custom_call.1} parent=1 // pred_check_branch
      %57 = sbr.rel (0) target = $region25
    $region24: #{tpu_custom_call.1} parent=1 // pred_region
      %59 = dma.done [#allocation7], 256
    $region25: #{tpu_custom_call.1} parent=1 // pred_fallthru
      _
    %s60 = sadd.s32 0, 0
    %s61 = smul.u32 2, %s60
    %s62 = sadd.s32 0, 0
    %s63 = smul.u32 2, %s62
    %p64 = scmp.eq.s32.totalorder 0, 0
    // Predicated region
    $region26: #{tpu_custom_call.1} parent=1 // pred_check
      %p65 = pneg %p64
    $region27: #{tpu_custom_call.1} parent=1 // pred_check_branch
      %67 = sbr.rel (%p65) target = $region29
    $region28: #{tpu_custom_call.1} parent=1 // pred_region
      %vm68 = vcmask 74752
      %69 = vst.msk [vmem:[#allocation8] sm:$0x3] %vm68, 0.0
    $region29: #{tpu_custom_call.1} parent=1 // pred_fallthru
      _
    %v70 = vld [vmem:[#allocation3] sm:$0xff]
    %v71 = vld [vmem:[#allocation3 + $0x8] sm:$0xff]
    %v72 = vld [vmem:[#allocation3 + $0x10] sm:$0xff]
    %v73 = vld [vmem:[#allocation3 + $0x18] sm:$0xff]
    %v74 = vld [vmem:[#allocation3 + $0x20] sm:$0xff]
    %v75 = vld [vmem:[#allocation3 + $0x28] sm:$0xff]
    %v76 = vld [vmem:[#allocation3 + $0x30] sm:$0xff]
    %v77 = vld [vmem:[#allocation3 + $0x38] sm:$0xff]
    %v78 = vld [vmem:[%s1] sm:$0x3]
    %v80 = vperm.slane %v78, 0
    %v81 = vperm.slane %v78, 1
    %v84 = vmul.f32 %v70, %v80
    %v85 = vmul.f32 %v71, %v81
    %v86 = vmul.f32 %v72, %v80
    %v87 = vmul.f32 %v73, %v81
    %v88 = vmul.f32 %v74, %v80
    %v89 = vmul.f32 %v75, %v81
    %v90 = vmul.f32 %v76, %v80
    %v91 = vmul.f32 %v77, %v81
    %vm92 = vcmask 588800
    %v93 = vsel %vm92, %v85, 0.0
    %v94 = vadd.f32 %v84, %v93
    %95 = vadd.xlane.f32.xlu0 %v94
    %v96 = vpop.xlane.xlu0 %95
    %v97 = vsel %vm92, %v87, 0.0
    %v98 = vadd.f32 %v86, %v97
    %99 = vadd.xlane.f32.xlu0 %v98
    %v100 = vpop.xlane.xlu0 %99
    %v101 = vsel %vm92, %v89, 0.0
    %v102 = vadd.f32 %v88, %v101
    %103 = vadd.xlane.f32.xlu0 %v102
    %v104 = vpop.xlane.xlu0 %103
    %v105 = vsel %vm92, %v91, 0.0
    %v106 = vadd.f32 %v90, %v105
    %107 = vadd.xlane.f32.xlu0 %v106
    %v108 = vpop.xlane.xlu0 %107
    %s109 = sld [smem:[#allocation2]]
    %v110 = vstv %s109
    %v111 = vadd.f32 %v96, %v110
    %v112 = vadd.f32 %v100, %v110
    %v113 = vadd.f32 %v104, %v110
    %v114 = vadd.f32 %v108, %v110
    %v115 = vmax.f32 %v111, 0.0
    %v116 = vmax.f32 %v112, 0.0
    %v117 = vmax.f32 %v113, 0.0
    %v118 = vmax.f32 %v114, 0.0
    %v119 = vld [vmem:[#allocation6] sm:$0xff]
    %v120 = vld [vmem:[#allocation6 + $0x8] sm:$0xff]
    %v121 = vld [vmem:[#allocation8] sm:$0x3]
    %v126 = vlaneseq
    %v127 = vand.u32 %v126, 127
    %v128 = vperm.slane %v115, %v127
    %v129 = vadd.s32 %v127, 4294967288
    %v130 = vperm.slane %v116, %v129
    %vm131 = vcmask 130112
    %v132 = vsel %vm131, %v130, %v128
    %v133 = vperm.slane %v117, %v127
    %v134 = vperm.slane %v118, %v129
    %v135 = vsel %vm131, %v134, %v133
    %vm136 = vcmask 1041409
    %v137 = vsel %vm136, %v135, %v132
    %vm138 = vcmask 130048
    %v139 = vsel %vm138, %v137, 0
    %141 = vmatpush.msra.mxu0 0.0
    %142 = vmatpush.msra.mxu0 0.0
    %143 = vmatpush.msra.mxu0 0.0
    %144 = vmatpush.msra.mxu0 0.0
    %145 = vmatpush.msra.mxu0 0.0
    %146 = vmatpush.msra.mxu0 0.0
    %147 = vmatpush.msra.mxu0 0.0
    %148 = vmatpush.msra.mxu0 0.0
    %149 = vmatpush.msra.mxu0 0.0
    %150 = vmatpush.msra.mxu0 0.0
    %151 = vmatpush.msra.mxu0 0.0
    %152 = vmatpush.msra.mxu0 0.0
    %153 = vmatpush.msra.mxu0 0.0
    %154 = vmatpush.msra.mxu0 0.0
    %155 = vmatpush.msra.mxu0 %v120
    %156 = vmatpush.msra.mxu0 %v119
    %157 = vmatmul.f32.gmra.mxu0 %v139
    %v158 = vpop.f32.mrf.mxu0
    %v159 = vadd.f32 0.0, %v158
    %160 = vdwg.mxu0
    %v161 = vadd.f32 %v121, %v159
    %vm162 = vcmask 74752
    %163 = vst.msk [vmem:[#allocation8] sm:$0x3] %vm162, %v161
    // Predicated region
    $region30: #{tpu_custom_call.1} parent=1 // pred_check
      _
    $region31: #{tpu_custom_call.1} parent=1 // pred_check_branch
      %165 = sbr.rel (0) target = $region33
    $region32: #{tpu_custom_call.1} parent=1 // pred_region
      %167 = vsyncadd [#allocation5], 0
      %s169 = sshll.u32 [#allocation8], 4
      %s170 = int_to_ptr.vmem [resolvable:$true] %s169
      %s171 = sshll.u32 %s4, 4
      %s172 = int_to_ptr.hbm [resolvable:$true] %s171
      %174 = dma.vmem_to_hbm [thread:$0]  %s170, 32, %s172, [#allocation5]
    $region33: #{tpu_custom_call.1} parent=1 // pred_fallthru
      _
    // Predicated region
    $region34: #{tpu_custom_call.1} parent=1 // pred_check
      _
    $region35: #{tpu_custom_call.1} parent=1 // pred_check_branch
      %176 = sbr.rel (0) target = $region37
    $region36: #{tpu_custom_call.1} parent=1 // pred_region
      %178 = dma.done [#allocation5], 32
    $region37: #{tpu_custom_call.1} parent=1 // pred_fallthru
      _
    %179 = vsyncpa [#allocation4], 1
    %180 = vsyncpa [#allocation7], 1
    %181 = vsyncpa [#allocation5], 1

</llo_original>
